<compile_context>
chip_gen: v5e
topology: v5e:2x2
jax: 0.10.0
libtpu: 0.0.40
codegen_flags: <defaults>
</compile_context>

<pallas_src>
import functools
import math

import jax
import jax.numpy as jnp
from jax.experimental import pallas as pl
from jax.experimental.pallas import tpu as pltpu


# -----------------------------------------------------------------------------
# Kernels
# -----------------------------------------------------------------------------
def _tok_embed_kernel_vpu(x_ref, w_ref, pos_ref, out_ref, *, d_in):
    """Tiny-K path: unrolled outer-product on the VPU (no MXU).

    x_ref  : (TM, D_in)  rows of the flattened (B*S, D_in) input
    w_ref  : (D_in, TN)  weight tile, pre-scaled by sqrt(hid_dim)
    pos_ref: (TM, TN)    positional encoding + bias*sqrt(hid_dim), tiled to TM rows
    out_ref: (TM, TN)
    """
    x = x_ref[...]
    w = w_ref[...]
    y = x[:, 0:1] * w[0:1, :]
    for k in range(1, d_in):               # static unroll, d_in is tiny
        y = y + x[:, k:k + 1] * w[k:k + 1, :]
    out_ref[...] = (y + pos_ref[...]).astype(out_ref.dtype)


def _tok_embed_kernel_mxu(x_ref, w_ref, pos_ref, out_ref):
    """General-K path: MXU matmul with f32 accumulation."""
    y = jnp.dot(x_ref[...], w_ref[...], preferred_element_type=jnp.float32)
    out_ref[...] = (y + pos_ref[...]).astype(out_ref.dtype)


# -----------------------------------------------------------------------------
# Tile-size selection helpers
# -----------------------------------------------------------------------------
def _choose_row_tile(batch, seq_len, target=512):
    """Largest TM = k*seq_len (k | batch), TM <= target, layout-legal."""
    rows = batch * seq_len
    for k in range(batch, 0, -1):
        if batch % k:
            continue
        tm = k * seq_len
        if tm <= target and (tm % 8 == 0 or tm == rows):
            return tm
    return rows  # full extent is always layout-legal


def _choose_col_tile(hid_dim, target=512):
    """Full H when small; otherwise a multiple of 128 that divides H."""
    if hid_dim <= target:
        return hid_dim
    tn = (target // 128) * 128
    while tn > 128 and hid_dim % tn:
        tn -= 128
    return tn if hid_dim % tn == 0 else hid_dim


# -----------------------------------------------------------------------------
# Wrapper
# -----------------------------------------------------------------------------
def transformer_block_forward(src, weight, bias, pos, hid_dim,
                              row_tile_target=512, col_tile_target=512):
    """src: (B, S, D_in) f32; weight: (D_in, H); bias: (H,); pos: (S, H)."""
    B, S, D_in = src.shape
    H = hid_dim
    rows = B * S
    scale = float(math.sqrt(hid_dim))

    TM = _choose_row_tile(B, S, row_tile_target)
    TN = _choose_col_tile(H, col_tile_target)
    nM = rows // TM
    nN = H // TN

    # One-time host-side folding (amortized over all tiles):
    #   (x @ w + b) * scale + pos  ==  x @ (w*scale) + (pos + b*scale)
    w_scaled = (weight * scale).astype(jnp.float32)          # (D_in, H)
    pos_plus = pos + bias[None, :] * scale                   # (S, H)
    # TM is a multiple of S and flattening is batch-major, so every row tile
    # starts at sequence position 0 -> one shared (TM, H) constant.
    pos_tile = jnp.tile(pos_plus, (TM // S, 1))               # (TM, H)

    src2d = src.reshape(rows, D_in)

    if D_in <= 32:
        kernel = functools.partial(_tok_embed_kernel_vpu, d_in=D_in)
    else:
        kernel = _tok_embed_kernel_mxu

    out2d = pl.pallas_call(
        kernel,
        out_shape=jax.ShapeDtypeStruct((rows, H), jnp.float32),
        grid_spec=pltpu.PrefetchScalarGridSpec(
            num_scalar_prefetch=0,
            # Hidden (N) axis outer so the weight tile stays resident across
            # all row tiles; both axes are independent -> "parallel".
            grid=(nN, nM),
            in_specs=[
                pl.BlockSpec((TM, D_in), lambda n, m: (m, 0)),   # src rows
                pl.BlockSpec((D_in, TN), lambda n, m: (0, n)),   # scaled weight
                pl.BlockSpec((TM, TN), lambda n, m: (0, n)),     # pos + bias*scale
            ],
            out_specs=pl.BlockSpec((TM, TN), lambda n, m: (m, n)),
        ),
        compiler_params=pltpu.CompilerParams(
            dimension_semantics=("parallel", "parallel"),
            vmem_limit_bytes=32 * 1024 * 1024,   # safe on v5e/v6e/v7x
        ),
    )(src2d, w_scaled, pos_tile)

    return out2d.reshape(B, S, H)


# -----------------------------------------------------------------------------
# Glue: positional encoding + deterministic parameter init (plain JAX)
# -----------------------------------------------------------------------------
def positional_encoding(seq_len, hid_dim, pos_enc_scale=1.0):
    position = jnp.arange(0, seq_len, dtype=jnp.float32)[:, None]             # (S, 1)
    div_term = jnp.exp(
        jnp.arange(0, hid_dim, 2, dtype=jnp.float32) * (-math.log(10000.0) / hid_dim)
    )                                                                          # (H/2,)
    angles = position * div_term                                               # (S, H/2)
    pe = jnp.zeros((seq_len, hid_dim), dtype=jnp.float32)
    pe = pe.at[:, 0::2].set(jnp.sin(angles) * pos_enc_scale)
    pe = pe.at[:, 1::2].set(jnp.cos(angles) * pos_enc_scale)
    return pe


def init_linear_params(key, in_features, out_features):
    # Mimic nn.Linear default init: U(-1/sqrt(fan_in), 1/sqrt(fan_in)).
    kw, kb = jax.random.split(key)
    bound = 1.0 / math.sqrt(in_features)
    # Stored as (in, out) so the kernel does x @ W directly.
    weight = jax.random.uniform(kw, (in_features, out_features), jnp.float32, -bound, bound)
    bias = jax.random.uniform(kb, (out_features,), jnp.float32, -bound, bound)
    return weight, bias


def reference_forward(src, weight, bias, pos, hid_dim):
    y = jnp.einsum("bsd,dh->bsh", src, weight) + bias
    return y * math.sqrt(hid_dim) + pos[None, :, :]


if __name__ == "__main__":
    # Small shapes consistent with the module defaults.
    batch = 2
    seq_len = 8
    input_dim = 1
    hid_dim = 16
    pos_enc_scale = 1.0

    key = jax.random.PRNGKey(0)
    k_src, k_lin = jax.random.split(key)

    src = jax.random.normal(k_src, (batch, seq_len, input_dim), dtype=jnp.float32)
    weight, bias = init_linear_params(k_lin, input_dim, hid_dim)
    pos = positional_encoding(seq_len, hid_dim, pos_enc_scale)

    out = transformer_block_forward(src, weight, bias, pos, hid_dim)
    out = jax.block_until_ready(out)

    ref = reference_forward(src, weight, bias, pos, hid_dim)
    assert out.shape == (batch, seq_len, hid_dim)
    assert jnp.allclose(out, ref, atol=1e-5, rtol=1e-5), "mismatch vs reference"

    print("KERNEL_OK")
</pallas_src>

<mosaic_0001>
module attributes {stable_mosaic.version = 11 : i64} {
  func.func @_tok_embed_kernel_vpu(%arg0: i32, %arg1: i32, %arg2: memref<16x1xf32, #tpu.memory_space<vmem>>, %arg3: memref<1x16xf32, #tpu.memory_space<vmem>>, %arg4: memref<16x16xf32, #tpu.memory_space<vmem>>, %arg5: memref<16x16xf32, #tpu.memory_space<vmem>>) attributes {dimension_semantics = [#tpu.dimension_semantics<parallel>, #tpu.dimension_semantics<parallel>], iteration_bounds = array<i64: 1, 1>, scalar_prefetch = 0 : i64, scratch_operands = 0 : i64, tpu.core_type = #tpu.core_type<tc>, window_params = [{transform_indices = @transform_0, window_bounds = array<i64: 16, 1>}, {transform_indices = @transform_1, window_bounds = array<i64: 1, 16>}, {transform_indices = @transform_2, window_bounds = array<i64: 16, 16>}, {transform_indices = @transform_3, window_bounds = array<i64: 16, 16>}]} {
    %c0 = arith.constant 0 : index
    %c0_0 = arith.constant 0 : index
    %0 = vector.load %arg2[%c0, %c0_0] : memref<16x1xf32, #tpu.memory_space<vmem>>, vector<16x1xf32>
    %c0_1 = arith.constant 0 : index
    %c0_2 = arith.constant 0 : index
    %1 = vector.load %arg3[%c0_1, %c0_2] : memref<1x16xf32, #tpu.memory_space<vmem>>, vector<1x16xf32>
    %2 = vector.broadcast %0 : vector<16x1xf32> to vector<16x16xf32>
    %3 = vector.broadcast %1 : vector<1x16xf32> to vector<16x16xf32>
    %4 = arith.mulf %2, %3 : vector<16x16xf32>
    %c0_3 = arith.constant 0 : index
    %c0_4 = arith.constant 0 : index
    %5 = vector.load %arg4[%c0_3, %c0_4] : memref<16x16xf32, #tpu.memory_space<vmem>>, vector<16x16xf32>
    %6 = arith.addf %4, %5 : vector<16x16xf32>
    %c0_5 = arith.constant 0 : index
    %c0_6 = arith.constant 0 : index
    %7 = vector.load %arg5[%c0_5, %c0_6] : memref<16x16xf32, #tpu.memory_space<vmem>>, vector<16x16xf32>
    tpu.vector_store %arg5[%c0_5, %c0_6], %6 {strides = array<i32>} : memref<16x16xf32, #tpu.memory_space<vmem>>, vector<16x16xf32>,
    return
  }
  func.func @transform_0(%arg0: i32, %arg1: i32) -> (i32, i32) {
    %c0_i32 = arith.constant 0 : i32
    %c0_i32_0 = arith.constant 0 : i32
    return %arg1, %c0_i32 : i32, i32
  }
  func.func @transform_1(%arg0: i32, %arg1: i32) -> (i32, i32) {
    %c0_i32 = arith.constant 0 : i32
    %c0_i32_0 = arith.constant 0 : i32
    return %c0_i32, %arg0 : i32, i32
  }
  func.func @transform_2(%arg0: i32, %arg1: i32) -> (i32, i32) {
    %c0_i32 = arith.constant 0 : i32
    %c0_i32_0 = arith.constant 0 : i32
    return %c0_i32, %arg0 : i32, i32
  }
  func.func @transform_3(%arg0: i32, %arg1: i32) -> (i32, i32) {
    %c0_i32 = arith.constant 0 : i32
    return %arg1, %arg0 : i32, i32
  }
}

</mosaic_0001>

<llo_original>
// kernel: tpu_custom_call.1
$region0: #{tpu_custom_call.1}
  #allocation0 [shape = 'u32[]', space=smem, size = 0x4, offset = 0x4, fixed_abs, tag = 'smem constant byte address 0x4 - core index']
  #allocation1 [shape = 'u32[72,128]{1,0:T(1,128)}', space=vmem, size = 0x9000, scoped, tag = 'internal scratch']
  %s0 = inlined_call_operand.vmem [shape: f32[16,1], index: 0, kind: input, shape index: {}]
  %s1 = inlined_call_operand.vmem [shape: f32[1,16], index: 1, kind: input, shape index: {}]
  %s2 = inlined_call_operand.vmem [shape: f32[16,16], index: 2, kind: input, shape index: {}]
  %s3 = inlined_call_operand.hbm [shape: f32[16,16], index: 3, kind: output, shape index: {}]
  %s4 = sld [smem:[#allocation0]]
  $region22: #{tpu_custom_call.1} parent=0
    _
  %s6 = ssub.s32 1, %s4
  %s7 = scalar_select 0, %s6, %s4
  $region1: #{tpu_custom_call.1} parent=0
    #allocation2 [shape = 'u8[8192]{0}', space=vmem, size = 0x2000, scoped, tag = 'output window, operand 0, single buffered']
    #allocation3 [shape = 's32[1]{0}', space=sflag, size = 0x4, scoped, tag = 'scoped memory for tpu_custom_call.1']
    %8 = vsyncpa [#allocation3], 0
    // Predicated region
    $region2: #{tpu_custom_call.1} parent=1 // pred_check
      _
    $region3: #{tpu_custom_call.1} parent=1 // pred_check_branch
      %10 = sbr.rel (0) target = $region5
    $region4: #{tpu_custom_call.1} parent=1 // pred_region
      _
    $region5: #{tpu_custom_call.1} parent=1 // pred_fallthru
      _
    // Predicated region
    $region6: #{tpu_custom_call.1} parent=1 // pred_check
      _
    $region7: #{tpu_custom_call.1} parent=1 // pred_check_branch
      %12 = sbr.rel (0) target = $region9
    $region8: #{tpu_custom_call.1} parent=1 // pred_region
      _
    $region9: #{tpu_custom_call.1} parent=1 // pred_fallthru
      _
    // Predicated region
    $region10: #{tpu_custom_call.1} parent=1 // pred_check
      _
    $region11: #{tpu_custom_call.1} parent=1 // pred_check_branch
      %14 = sbr.rel (0) target = $region13
    $region12: #{tpu_custom_call.1} parent=1 // pred_region
      _
    $region13: #{tpu_custom_call.1} parent=1 // pred_fallthru
      _
    %v15 = vld [vmem:[%s0] sm:$0xff]
    %v16 = vld [vmem:[%s0 + $0x8] sm:$0xff]
    %v17 = vld [vmem:[%s1] sm:$0x1]
    %19 = vset.pattern.permute.xlu0 0
    %20 = vperm.xlu0 %19, %v15
    %v21 = vpop.permute.xlu0 %20
    %24 = vset.pattern.permute.xlu0 0
    %25 = vperm.xlu0 %24, %v16
    %v26 = vpop.permute.xlu0 %25
    %v29 = vperm.slane %v17, 0
    %v31 = vmul.f32 %v21, %v29
    %v32 = vmul.f32 %v26, %v29
    %v33 = vld [vmem:[%s2] sm:$0xff]
    %v34 = vld [vmem:[%s2 + $0x8] sm:$0xff]
    %v35 = vadd.f32 %v31, %v33
    %v36 = vadd.f32 %v32, %v34
    %vm37 = vcmask 130048
    %38 = vst.msk [vmem:[#allocation2] sm:$0xff] %vm37, %v35
    %39 = vst.msk [vmem:[#allocation2 + $0x8] sm:$0xff] %vm37, %v36
    // Predicated region
    $region14: #{tpu_custom_call.1} parent=1 // pred_check
      _
    $region15: #{tpu_custom_call.1} parent=1 // pred_check_branch
      %41 = sbr.rel (0) target = $region17
    $region16: #{tpu_custom_call.1} parent=1 // pred_region
      %43 = vsyncadd [#allocation3], 0
      %s44 = sshll.u32 [#allocation2], 4
      %s45 = int_to_ptr.vmem [resolvable:$true] %s44
      %s46 = sshll.u32 %s3, 4
      %s47 = int_to_ptr.hbm [resolvable:$true] %s46
      %52 = dma.vmem_to_hbm [thread:$0]  %s45, 256, %s47, [#allocation3], 128, 128, 8
    $region17: #{tpu_custom_call.1} parent=1 // pred_fallthru
      _
    // Predicated region
    $region18: #{tpu_custom_call.1} parent=1 // pred_check
      _
    $region19: #{tpu_custom_call.1} parent=1 // pred_check_branch
      %54 = sbr.rel (0) target = $region21
    $region20: #{tpu_custom_call.1} parent=1 // pred_region
      %56 = dma.done [#allocation3], 256
    $region21: #{tpu_custom_call.1} parent=1 // pred_fallthru
      _
    %57 = vsyncpa [#allocation3], 1

</llo_original>
